<compile_context>
chip_gen: v6e
topology: v6e:2x2x1
jax: 0.10.0
libtpu: 0.0.40
codegen_flags: <defaults>
</compile_context>

<pallas_src>
import functools
import math

import jax
import jax.numpy as jnp
from jax import lax
from jax.experimental import pallas as pl
from jax.experimental.pallas import tpu as pltpu


def _label_smoothing_kernel(tgt_ref, pred_ref, num_ref, den_ref,
                            m_sc, l_sc, rs_sc, tg_sc, ig_sc, *,
                            n_rows, vocab_size, smoothing, ignore_index):
    i = pl.program_id(0)                 # row-tile index      ("parallel")
    c = pl.program_id(1)                 # vocab-chunk index   ("arbitrary" reduction)
    nc = pl.num_programs(1)
    tn, vc = pred_ref.shape              # static block shape

    confidence = 1.0 - smoothing
    smooth_prob = smoothing / (vocab_size - 2)
    # Entropy of the smoothed target distribution (same constant for every valid row):
    #   sum_j td[j] * log(td[j] + 1e-12)  (ignore column contributes 0).
    c_ent = (confidence * math.log(confidence + 1e-12)
             + (vocab_size - 2) * smooth_prob * math.log(smooth_prob + 1e-12))

    @pl.when(c == 0)
    def _init():
        m_sc[...] = jnp.full((tn, 1), -jnp.inf, dtype=jnp.float32)
        l_sc[...] = jnp.zeros((tn, 1), jnp.float32)
        rs_sc[...] = jnp.zeros((tn, 1), jnp.float32)
        tg_sc[...] = jnp.zeros((tn, 1), jnp.float32)
        ig_sc[...] = jnp.zeros((tn, 1), jnp.float32)

    tgt = tgt_ref[...]                               # (TN, 1) int32, resident across c
    x = pred_ref[...].astype(jnp.float32)            # (TN, VC): only chunk-sized f32 temps

    # Running row-sum of the raw logits (smooth_prob * sum_j pred[j] term).
    rs_sc[...] += jnp.sum(x, axis=1, keepdims=True)

    # Target-logit gather: sum_j [j == tgt] * pred[j], accumulated chunk by chunk.
    col = lax.broadcasted_iota(jnp.int32, (tn, vc), 1)
    tg_sc[...] += jnp.sum(jnp.where(col == (tgt - c * vc), x, 0.0), axis=1, keepdims=True)
    # TODO(synk): on v7x the rowsum (and possibly the exp-sum) could ride the idle MXU via
    # jnp.dot(x, ones((vc, 128), f32)); only enable after a bundle dump confirms no extra
    # VMEM materialization.

    # Online logsumexp across vocab chunks.
    m_prev = m_sc[...]
    m_new = jnp.maximum(m_prev, jnp.max(x, axis=1, keepdims=True))
    l_sc[...] = (l_sc[...] * jnp.exp(m_prev - m_new)
                 + jnp.sum(jnp.exp(x - m_new), axis=1, keepdims=True))
    m_sc[...] = m_new

    # Logit of the ignored (PAD) column — lives in exactly one (static) chunk / lane.
    ig_chunk = ignore_index // vc
    ig_lane = ignore_index % vc

    @pl.when(c == ig_chunk)
    def _grab_ignore():
        ig_sc[...] = x[:, ig_lane:ig_lane + 1]

    @pl.when(c == nc - 1)
    def _finalize():
        lse = m_sc[...] + jnp.log(l_sc[...])                           # (TN, 1)
        dotp = (smooth_prob * rs_sc[...]
                + (confidence - smooth_prob) * tg_sc[...]
                - smooth_prob * ig_sc[...])                            # sum_j td[j]*pred[j]
        kl = c_ent + lse - dotp                                        # (TN, 1)

        # Row validity: real rows (ragged last row tile) with a non-PAD target.  Garbage
        # rows of a ragged tail may be NaN/inf, so select (NaN-safe); never kl * mask.
        row = lax.broadcasted_iota(jnp.int32, (tn, 1), 0) + i * tn
        valid = (row < n_rows) & (tgt != ignore_index)
        pnum = jnp.sum(jnp.where(valid, kl, 0.0))
        pden = jnp.sum(jnp.where(valid, 1.0, 0.0))

        # Lane-dense per-row-tile partial sums; each row tile writes its own block once.
        num_ref[...] = jnp.full((1, 1, 128), pnum, dtype=jnp.float32)
        den_ref[...] = jnp.full((1, 1, 128), pden, dtype=jnp.float32)


def _vmem_capacity_bytes():
    try:
        return int(pltpu.get_tpu_info().vmem_capacity_bytes)
    except Exception:
        return 64 * 1024 * 1024          # conservative fallback (v7x per-core VMEM)


def _pick_tiles(n_rows, vocab, itemsize, vmem_capacity, row_cap=1024):
    """Pick (row_tile, v_chunk).

    The budget covers the double-buffered native-dtype input block PLUS ~4 chunk-sized
    32-bit temporaries the kernel body materializes (upcast chunk, column iota, masked
    copy, exp result), so the pipeline stays double-buffered instead of spilling.
    """
    align = 16 if itemsize < 4 else 8            # sublane packing for bf16 vs f32

    # Vocab chunk: largest "nice" multiple of 128 that divides V, else the whole row.
    v_chunk = vocab
    for cand in (4096, 2048, 1024, 512, 256, 128):
        if vocab % cand == 0:
            v_chunk = cand
            break

    budget = vmem_capacity // 2                  # half of VMEM for blocks + temps
    per_row_bytes = v_chunk * (2 * itemsize + 4 * 4)
    tile = max(align, (min(row_cap, budget // max(per_row_bytes, 1)) // align) * align)

    # Keep >= 2 row tiles whenever possible so the "parallel" row axis feeds both v7x
    # TensorCores.  Harmless on single-TC parts (v5e/v6e).
    half = (((n_rows + 1) // 2) + align - 1) // align * align
    tile = min(tile, max(align, half))

    n_aligned = (n_rows + align - 1) // align * align
    tile = max(align, min(tile, n_aligned))
    return tile, v_chunk


def label_smoothing_loss(pred, target, *, smoothing=0.1, ignore_index=0,
                         row_tile=None, v_chunk=None):
    """pred: [B, S, V] float (f32/bf16 streamed natively), target: [B, S] int.

    Returns the scalar f32 label-smoothed KL loss matching the PyTorch reference.
    """
    b, s, v = pred.shape
    n = b * s
    pred2 = pred.reshape(n, v)                       # free reshape, native dtype (no astype/pad)
    tgt2 = target.reshape(n, 1).astype(jnp.int32)    # tiny

    itemsize = jnp.dtype(pred.dtype).itemsize
    vmem_cap = _vmem_capacity_bytes()
    auto_tile, auto_chunk = _pick_tiles(n, v, itemsize, vmem_cap)
    if row_tile is None:
        row_tile = auto_tile
    if v_chunk is None:
        v_chunk = auto_chunk
    assert v % v_chunk == 0, "v_chunk must divide the vocab size"

    num_row_tiles = pl.cdiv(n, row_tile)
    num_v_chunks = v // v_chunk
    vmem_limit = min(int(0.75 * vmem_cap), 100 * 1024 * 1024)

    kernel = functools.partial(_label_smoothing_kernel, n_rows=n, vocab_size=v,
                               smoothing=smoothing, ignore_index=ignore_index)

    num_parts, den_parts = pl.pallas_call(
        kernel,
        out_shape=(jax.ShapeDtypeStruct((num_row_tiles, 1, 128), jnp.float32),
                   jax.ShapeDtypeStruct((num_row_tiles, 1, 128), jnp.float32)),
        grid_spec=pltpu.PrefetchScalarGridSpec(
            num_scalar_prefetch=0,
            grid=(num_row_tiles, num_v_chunks),
            in_specs=[pl.BlockSpec((row_tile, 1), lambda i, c: (i, 0)),
                      pl.BlockSpec((row_tile, v_chunk), lambda i, c: (i, c))],
            out_specs=(pl.BlockSpec((1, 1, 128), lambda i, c: (i, 0, 0)),
                       pl.BlockSpec((1, 1, 128), lambda i, c: (i, 0, 0))),
            scratch_shapes=[pltpu.VMEM((row_tile, 1), jnp.float32)
                            for _ in range(5)]),
        compiler_params=pltpu.CompilerParams(
            dimension_semantics=("parallel", "arbitrary"),
            vmem_limit_bytes=vmem_limit),
    )(tgt2, pred2)

    num = jnp.sum(num_parts[:, 0, 0])
    den = jnp.sum(den_parts[:, 0, 0])
    return num / den


def _reference_loss(pred, target, *, smoothing=0.1, ignore_index=0):
    """Pure-JAX reference mirroring the PyTorch forward."""
    b, s, v = pred.shape
    pred = pred.reshape(-1, v).astype(jnp.float32)
    target = target.reshape(-1)
    smooth_prob = smoothing / (v - 2)
    confidence = 1.0 - smoothing
    col = jnp.arange(v)[None, :]
    true_dist = jnp.where(col == target[:, None], confidence, smooth_prob)
    true_dist = jnp.where(col == ignore_index, 0.0, true_dist)
    log_sm = jax.nn.log_softmax(pred, axis=1)
    kl = jnp.sum(true_dist * (jnp.log(true_dist + 1e-12) - log_sm), axis=1)
    mask = (target != ignore_index).astype(jnp.float32)
    return jnp.sum(kl * mask) / jnp.sum(mask)


if __name__ == "__main__":
    key = jax.random.PRNGKey(0)
    k1, k2, k3, k4 = jax.random.split(key, 4)

    # Test 1: f32 logits, single vocab chunk.
    B, S, V = 2, 8, 128
    pred = jax.random.normal(k1, (B, S, V), dtype=jnp.float32)
    target = jax.random.randint(k2, (B, S), 1, V, dtype=jnp.int32)
    target = target.at[0, 0].set(0)  # exercise the ignore_index (PAD) path
    loss = jax.block_until_ready(label_smoothing_loss(pred, target, smoothing=0.1, ignore_index=0))
    ref = jax.block_until_ready(_reference_loss(pred, target, smoothing=0.1, ignore_index=0))
    assert jnp.allclose(loss, ref, rtol=1e-4, atol=1e-4), (loss, ref)

    # Test 2: bf16 logits streamed in native dtype (kernel upcasts per chunk internally).
    pred_bf16 = pred.astype(jnp.bfloat16)
    loss_bf = jax.block_until_ready(
        label_smoothing_loss(pred_bf16, target, smoothing=0.1, ignore_index=0))
    ref_bf = jax.block_until_ready(
        _reference_loss(pred_bf16, target, smoothing=0.1, ignore_index=0))
    assert jnp.allclose(loss_bf, ref_bf, rtol=1e-3, atol=1e-3), (loss_bf, ref_bf)

    # Test 3: ragged row count + multiple vocab chunks (online logsumexp across chunks).
    B2, S2, V2 = 2, 7, 384
    pred3 = jax.random.normal(k3, (B2, S2, V2), dtype=jnp.float32)
    target3 = jax.random.randint(k4, (B2, S2), 1, V2, dtype=jnp.int32)
    target3 = target3.at[1, 3].set(0)
    loss3 = jax.block_until_ready(label_smoothing_loss(pred3, target3, smoothing=0.1, ignore_index=0))
    ref3 = jax.block_until_ready(_reference_loss(pred3, target3, smoothing=0.1, ignore_index=0))
    assert jnp.allclose(loss3, ref3, rtol=1e-4, atol=1e-4), (loss3, ref3)

    print("KERNEL_OK")
</pallas_src>

<mosaic_0001>
module attributes {stable_mosaic.version = 11 : i64} {
  func.func @_label_smoothing_kernel(%arg0: i32, %arg1: i32, %arg2: memref<8x1xi32, #tpu.memory_space<vmem>>, %arg3: memref<8x128xf32, #tpu.memory_space<vmem>>, %arg4: memref<1x1x128xf32, #tpu.memory_space<vmem>>, %arg5: memref<1x1x128xf32, #tpu.memory_space<vmem>>, %arg6: memref<8x1xf32, #tpu.memory_space<vmem>>, %arg7: memref<8x1xf32, #tpu.memory_space<vmem>>, %arg8: memref<8x1xf32, #tpu.memory_space<vmem>>, %arg9: memref<8x1xf32, #tpu.memory_space<vmem>>, %arg10: memref<8x1xf32, #tpu.memory_space<vmem>>) attributes {dimension_semantics = [#tpu.dimension_semantics<parallel>, #tpu.dimension_semantics<arbitrary>], iteration_bounds = array<i64: 2, 1>, scalar_prefetch = 0 : i64, scratch_operands = 5 : i64, tpu.core_type = #tpu.core_type<tc>, window_params = [{transform_indices = @transform_0, window_bounds = array<i64: 8, 1>}, {transform_indices = @transform_1, window_bounds = array<i64: 8, 128>}, {transform_indices = @transform_2, window_bounds = array<i64: 1, 1, 128>}, {transform_indices = @transform_3, window_bounds = array<i64: 1, 1, 128>}]} {
    %c0_i32 = arith.constant 0 : i32
    %0 = arith.cmpi eq, %arg1, %c0_i32 : i32
    %1 = arith.extui %0 : i1 to i32
    %c0_i32_0 = arith.constant 0 : i32
    %2 = arith.cmpi ne, %1, %c0_i32_0 : i32
    scf.if %2 {
      %cst_28 = arith.constant 0xFF800000 : f32
      %45 = vector.broadcast %cst_28 : f32 to vector<8x1xf32>
      %c0_29 = arith.constant 0 : index
      %c0_30 = arith.constant 0 : index
      %46 = vector.load %arg6[%c0_29, %c0_30] : memref<8x1xf32, #tpu.memory_space<vmem>>, vector<8x1xf32>
      tpu.vector_store %arg6[%c0_29, %c0_30], %45 {strides = array<i32>} : memref<8x1xf32, #tpu.memory_space<vmem>>, vector<8x1xf32>,
      %cst_31 = arith.constant 0.000000e+00 : f32
      %47 = vector.broadcast %cst_31 : f32 to vector<8x1xf32>
      %c0_32 = arith.constant 0 : index
      %c0_33 = arith.constant 0 : index
      %48 = vector.load %arg7[%c0_32, %c0_33] : memref<8x1xf32, #tpu.memory_space<vmem>>, vector<8x1xf32>
      tpu.vector_store %arg7[%c0_32, %c0_33], %47 {strides = array<i32>} : memref<8x1xf32, #tpu.memory_space<vmem>>, vector<8x1xf32>,
      %cst_34 = arith.constant 0.000000e+00 : f32
      %49 = vector.broadcast %cst_34 : f32 to vector<8x1xf32>
      %c0_35 = arith.constant 0 : index
      %c0_36 = arith.constant 0 : index
      %50 = vector.load %arg8[%c0_35, %c0_36] : memref<8x1xf32, #tpu.memory_space<vmem>>, vector<8x1xf32>
      tpu.vector_store %arg8[%c0_35, %c0_36], %49 {strides = array<i32>} : memref<8x1xf32, #tpu.memory_space<vmem>>, vector<8x1xf32>,
      %cst_37 = arith.constant 0.000000e+00 : f32
      %51 = vector.broadcast %cst_37 : f32 to vector<8x1xf32>
      %c0_38 = arith.constant 0 : index
      %c0_39 = arith.constant 0 : index
      %52 = vector.load %arg9[%c0_38, %c0_39] : memref<8x1xf32, #tpu.memory_space<vmem>>, vector<8x1xf32>
      tpu.vector_store %arg9[%c0_38, %c0_39], %51 {strides = array<i32>} : memref<8x1xf32, #tpu.memory_space<vmem>>, vector<8x1xf32>,
      %cst_40 = arith.constant 0.000000e+00 : f32
      %53 = vector.broadcast %cst_40 : f32 to vector<8x1xf32>
      %c0_41 = arith.constant 0 : index
      %c0_42 = arith.constant 0 : index
      %54 = vector.load %arg10[%c0_41, %c0_42] : memref<8x1xf32, #tpu.memory_space<vmem>>, vector<8x1xf32>
      tpu.vector_store %arg10[%c0_41, %c0_42], %53 {strides = array<i32>} : memref<8x1xf32, #tpu.memory_space<vmem>>, vector<8x1xf32>,
    } else {
    }
    %c0 = arith.constant 0 : index
    %c0_1 = arith.constant 0 : index
    %3 = vector.load %arg2[%c0, %c0_1] : memref<8x1xi32, #tpu.memory_space<vmem>>, vector<8x1xi32>
    %c0_2 = arith.constant 0 : index
    %c0_3 = arith.constant 0 : index
    %4 = vector.load %arg3[%c0_2, %c0_3] : memref<8x128xf32, #tpu.memory_space<vmem>>, vector<8x128xf32>
    %c0_4 = arith.constant 0 : index
    %c0_5 = arith.constant 0 : index
    %5 = vector.load %arg8[%c0_4, %c0_5] : memref<8x1xf32, #tpu.memory_space<vmem>>, vector<8x1xf32>
    %cst = arith.constant dense<0.000000e+00> : vector<8xf32>
    %6 = vector.multi_reduction <add>, %4, %cst [1] : vector<8x128xf32> to vector<8xf32>
    %7 = vector.shape_cast %6 : vector<8xf32> to vector<8x1xf32>
    %8 = arith.addf %5, %7 : vector<8x1xf32>
    %c0_6 = arith.constant 0 : index
    %c0_7 = arith.constant 0 : index
    %9 = vector.load %arg8[%c0_6, %c0_7] : memref<8x1xf32, #tpu.memory_space<vmem>>, vector<8x1xf32>
    tpu.vector_store %arg8[%c0_6, %c0_7], %8 {strides = array<i32>} : memref<8x1xf32, #tpu.memory_space<vmem>>, vector<8x1xf32>,
    %10 = tpu.iota {dimensions = array<i32: 1>} : vector<8x128xi32>
    %c0_8 = arith.constant 0 : index
    %c0_9 = arith.constant 0 : index
    %11 = vector.load %arg9[%c0_8, %c0_9] : memref<8x1xf32, #tpu.memory_space<vmem>>, vector<8x1xf32>
    %c128_i32 = arith.constant 128 : i32
    %12 = arith.muli %arg1, %c128_i32 : i32
    %13 = vector.broadcast %12 : i32 to vector<8x1xi32>
    %14 = arith.subi %3, %13 : vector<8x1xi32>
    %15 = vector.broadcast %14 : vector<8x1xi32> to vector<8x128xi32>
    %16 = arith.cmpi eq, %10, %15 : vector<8x128xi32>
    %cst_10 = arith.constant 0.000000e+00 : f32
    %17 = vector.broadcast %cst_10 : f32 to vector<8x128xf32>
    %18 = arith.select %16, %4, %17 : vector<8x128xi1>, vector<8x128xf32>
    %cst_11 = arith.constant dense<0.000000e+00> : vector<8xf32>
    %19 = vector.multi_reduction <add>, %18, %cst_11 [1] : vector<8x128xf32> to vector<8xf32>
    %20 = vector.shape_cast %19 : vector<8xf32> to vector<8x1xf32>
    %21 = arith.addf %11, %20 : vector<8x1xf32>
    %c0_12 = arith.constant 0 : index
    %c0_13 = arith.constant 0 : index
    %22 = vector.load %arg9[%c0_12, %c0_13] : memref<8x1xf32, #tpu.memory_space<vmem>>, vector<8x1xf32>
    tpu.vector_store %arg9[%c0_12, %c0_13], %21 {strides = array<i32>} : memref<8x1xf32, #tpu.memory_space<vmem>>, vector<8x1xf32>,
    %c0_14 = arith.constant 0 : index
    %c0_15 = arith.constant 0 : index
    %23 = vector.load %arg6[%c0_14, %c0_15] : memref<8x1xf32, #tpu.memory_space<vmem>>, vector<8x1xf32>
    %cst_16 = arith.constant dense<0xFF800000> : vector<8xf32>
    %24 = vector.multi_reduction <maximumf>, %4, %cst_16 [1] : vector<8x128xf32> to vector<8xf32>
    %25 = vector.shape_cast %24 : vector<8xf32> to vector<8x1xf32>
    %26 = arith.maximumf %23, %25 : vector<8x1xf32>
    %c0_17 = arith.constant 0 : index
    %c0_18 = arith.constant 0 : index
    %27 = vector.load %arg7[%c0_17, %c0_18] : memref<8x1xf32, #tpu.memory_space<vmem>>, vector<8x1xf32>
    %28 = arith.subf %23, %26 : vector<8x1xf32>
    %29 = math.exp %28 : vector<8x1xf32>
    %30 = arith.mulf %27, %29 : vector<8x1xf32>
    %31 = vector.broadcast %26 : vector<8x1xf32> to vector<8x128xf32>
    %32 = arith.subf %4, %31 : vector<8x128xf32>
    %33 = math.exp %32 : vector<8x128xf32>
    %cst_19 = arith.constant dense<0.000000e+00> : vector<8xf32>
    %34 = vector.multi_reduction <add>, %33, %cst_19 [1] : vector<8x128xf32> to vector<8xf32>
    %35 = vector.shape_cast %34 : vector<8xf32> to vector<8x1xf32>
    %36 = arith.addf %30, %35 : vector<8x1xf32>
    %c0_20 = arith.constant 0 : index
    %c0_21 = arith.constant 0 : index
    %37 = vector.load %arg7[%c0_20, %c0_21] : memref<8x1xf32, #tpu.memory_space<vmem>>, vector<8x1xf32>
    tpu.vector_store %arg7[%c0_20, %c0_21], %36 {strides = array<i32>} : memref<8x1xf32, #tpu.memory_space<vmem>>, vector<8x1xf32>,
    %c0_22 = arith.constant 0 : index
    %c0_23 = arith.constant 0 : index
    %38 = vector.load %arg6[%c0_22, %c0_23] : memref<8x1xf32, #tpu.memory_space<vmem>>, vector<8x1xf32>
    tpu.vector_store %arg6[%c0_22, %c0_23], %26 {strides = array<i32>} : memref<8x1xf32, #tpu.memory_space<vmem>>, vector<8x1xf32>,
    %c0_i32_24 = arith.constant 0 : i32
    %39 = arith.cmpi eq, %arg1, %c0_i32_24 : i32
    %40 = arith.extui %39 : i1 to i32
    %c0_i32_25 = arith.constant 0 : i32
    %41 = arith.cmpi ne, %40, %c0_i32_25 : i32
    scf.if %41 {
      %45 = vector.extract_strided_slice %4 {offsets = [0, 0], sizes = [8, 1], strides = [1, 1]} : vector<8x128xf32> to vector<8x1xf32>
      %c0_28 = arith.constant 0 : index
      %c0_29 = arith.constant 0 : index
      %46 = vector.load %arg10[%c0_28, %c0_29] : memref<8x1xf32, #tpu.memory_space<vmem>>, vector<8x1xf32>
      tpu.vector_store %arg10[%c0_28, %c0_29], %45 {strides = array<i32>} : memref<8x1xf32, #tpu.memory_space<vmem>>, vector<8x1xf32>,
    } else {
    }
    %c0_i32_26 = arith.constant 0 : i32
    %42 = arith.cmpi eq, %arg1, %c0_i32_26 : i32
    %43 = arith.extui %42 : i1 to i32
    %c0_i32_27 = arith.constant 0 : i32
    %44 = arith.cmpi ne, %43, %c0_i32_27 : i32
    scf.if %44 {
      %c0_28 = arith.constant 0 : index
      %c0_29 = arith.constant 0 : index
      %45 = vector.load %arg6[%c0_28, %c0_29] : memref<8x1xf32, #tpu.memory_space<vmem>>, vector<8x1xf32>
      %c0_30 = arith.constant 0 : index
      %c0_31 = arith.constant 0 : index
      %46 = vector.load %arg7[%c0_30, %c0_31] : memref<8x1xf32, #tpu.memory_space<vmem>>, vector<8x1xf32>
      %47 = math.log %46 : vector<8x1xf32>
      %48 = arith.addf %45, %47 : vector<8x1xf32>
      %c0_32 = arith.constant 0 : index
      %c0_33 = arith.constant 0 : index
      %49 = vector.load %arg8[%c0_32, %c0_33] : memref<8x1xf32, #tpu.memory_space<vmem>>, vector<8x1xf32>
      %cst_34 = arith.constant 7.93650805E-4 : f32
      %50 = vector.broadcast %cst_34 : f32 to vector<8x1xf32>
      %51 = arith.mulf %50, %49 : vector<8x1xf32>
      %c0_35 = arith.constant 0 : index
      %c0_36 = arith.constant 0 : index
      %52 = vector.load %arg9[%c0_35, %c0_36] : memref<8x1xf32, #tpu.memory_space<vmem>>, vector<8x1xf32>
      %cst_37 = arith.constant 0.89920634 : f32
      %53 = vector.broadcast %cst_37 : f32 to vector<8x1xf32>
      %54 = arith.mulf %53, %52 : vector<8x1xf32>
      %55 = arith.addf %51, %54 : vector<8x1xf32>
      %c0_38 = arith.constant 0 : index
      %c0_39 = arith.constant 0 : index
      %56 = vector.load %arg10[%c0_38, %c0_39] : memref<8x1xf32, #tpu.memory_space<vmem>>, vector<8x1xf32>
      %cst_40 = arith.constant 7.93650805E-4 : f32
      %57 = vector.broadcast %cst_40 : f32 to vector<8x1xf32>
      %58 = arith.mulf %57, %56 : vector<8x1xf32>
      %59 = arith.subf %55, %58 : vector<8x1xf32>
      %cst_41 = arith.constant -0.808711171 : f32
      %60 = vector.broadcast %cst_41 : f32 to vector<8x1xf32>
      %61 = arith.addf %60, %48 : vector<8x1xf32>
      %62 = arith.subf %61, %59 : vector<8x1xf32>
      %63 = tpu.iota {dimensions = array<i32: 0>} : vector<8x1xi32>
      %c8_i32 = arith.constant 8 : i32
      %64 = arith.muli %arg0, %c8_i32 : i32
      %65 = vector.broadcast %64 : i32 to vector<8x1xi32>
      %66 = arith.addi %63, %65 : vector<8x1xi32>
      %c16_i32 = arith.constant 16 : i32
      %67 = vector.broadcast %c16_i32 : i32 to vector<8x1xi32>
      %68 = arith.cmpi slt, %66, %67 : vector<8x1xi32>
      %c0_i32_42 = arith.constant 0 : i32
      %69 = vector.broadcast %c0_i32_42 : i32 to vector<8x1xi32>
      %70 = arith.cmpi ne, %3, %69 : vector<8x1xi32>
      %71 = arith.andi %68, %70 : vector<8x1xi1>
      %cst_43 = arith.constant 0.000000e+00 : f32
      %72 = vector.broadcast %cst_43 : f32 to vector<8x1xf32>
      %73 = arith.select %71, %62, %72 : vector<8x1xi1>, vector<8x1xf32>
      %74 = vector.shape_cast %73 : vector<8x1xf32> to vector<1x8x1xf32>
      %cst_44 = arith.constant dense<0.000000e+00> : vector<1xf32>
      %75 = vector.multi_reduction <add>, %74, %cst_44 [1, 2] : vector<1x8x1xf32> to vector<1xf32>
      %76 = vector.shape_cast %75 : vector<1xf32> to vector<1x1x1xf32>
      %77 = vector.extract %76[0, 0, 0] : f32 from vector<1x1x1xf32>
      %cst_45 = arith.constant 1.000000e+00 : f32
      %cst_46 = arith.constant 0.000000e+00 : f32
      %78 = vector.broadcast %cst_45 : f32 to vector<8x1xf32>
      %79 = vector.broadcast %cst_46 : f32 to vector<8x1xf32>
      %80 = arith.select %71, %78, %79 : vector<8x1xi1>, vector<8x1xf32>
      %81 = vector.shape_cast %80 : vector<8x1xf32> to vector<1x8x1xf32>
      %cst_47 = arith.constant dense<0.000000e+00> : vector<1xf32>
      %82 = vector.multi_reduction <add>, %81, %cst_47 [1, 2] : vector<1x8x1xf32> to vector<1xf32>
      %83 = vector.shape_cast %82 : vector<1xf32> to vector<1x1x1xf32>
      %84 = vector.extract %83[0, 0, 0] : f32 from vector<1x1x1xf32>
      %85 = vector.broadcast %77 : f32 to vector<1x1x128xf32>
      %c0_48 = arith.constant 0 : index
      %c0_49 = arith.constant 0 : index
      %c0_50 = arith.constant 0 : index
      %86 = vector.load %arg4[%c0_48, %c0_49, %c0_50] : memref<1x1x128xf32, #tpu.memory_space<vmem>>, vector<1x1x128xf32>
      tpu.vector_store %arg4[%c0_48, %c0_49, %c0_50], %85 {strides = array<i32>} : memref<1x1x128xf32, #tpu.memory_space<vmem>>, vector<1x1x128xf32>,
      %87 = vector.broadcast %84 : f32 to vector<1x1x128xf32>
      %c0_51 = arith.constant 0 : index
      %c0_52 = arith.constant 0 : index
      %c0_53 = arith.constant 0 : index
      %88 = vector.load %arg5[%c0_51, %c0_52, %c0_53] : memref<1x1x128xf32, #tpu.memory_space<vmem>>, vector<1x1x128xf32>
      tpu.vector_store %arg5[%c0_51, %c0_52, %c0_53], %87 {strides = array<i32>} : memref<1x1x128xf32, #tpu.memory_space<vmem>>, vector<1x1x128xf32>,
    } else {
    }
    return
  }
  func.func @transform_0(%arg0: i32, %arg1: i32) -> (i32, i32) {
    %c0_i32 = arith.constant 0 : i32
    %c0_i32_0 = arith.constant 0 : i32
    return %arg0, %c0_i32 : i32, i32
  }
  func.func @transform_1(%arg0: i32, %arg1: i32) -> (i32, i32) {
    %c0_i32 = arith.constant 0 : i32
    return %arg0, %arg1 : i32, i32
  }
  func.func @transform_2(%arg0: i32, %arg1: i32) -> (i32, i32, i32) {
    %c0_i32 = arith.constant 0 : i32
    %c0_i32_0 = arith.constant 0 : i32
    %c0_i32_1 = arith.constant 0 : i32
    return %arg0, %c0_i32, %c0_i32_0 : i32, i32, i32
  }
  func.func @transform_3(%arg0: i32, %arg1: i32) -> (i32, i32, i32) {
    %c0_i32 = arith.constant 0 : i32
    %c0_i32_0 = arith.constant 0 : i32
    %c0_i32_1 = arith.constant 0 : i32
    return %arg0, %c0_i32, %c0_i32_0 : i32, i32, i32
  }
}

</mosaic_0001>

<llo_original>
// kernel: tpu_custom_call.1
$region0: #{tpu_custom_call.1}
  #allocation0 [shape = 'u32[]', space=smem, size = 0x4, offset = 0x4, fixed_abs, tag = 'smem constant byte address 0x4 - core index']
  #allocation1 [shape = 'u32[144,128]{1,0:T(1,128)}', space=vmem, size = 0x12000, scoped, tag = 'internal scratch']
  #allocation2 [shape = 'f32[8,1]{1,0:T(8,128)}', space=vmem, size = 0x1000, scoped, tag = 'scratch operand']
  #allocation3 [shape = 'f32[8,1]{1,0:T(8,128)}', space=vmem, size = 0x1000, scoped, tag = 'scratch operand']
  #allocation4 [shape = 'f32[8,1]{1,0:T(8,128)}', space=vmem, size = 0x1000, scoped, tag = 'scratch operand']
  #allocation5 [shape = 'f32[8,1]{1,0:T(8,128)}', space=vmem, size = 0x1000, scoped, tag = 'scratch operand']
  #allocation6 [shape = 'f32[8,1]{1,0:T(8,128)}', space=vmem, size = 0x1000, scoped, tag = 'scratch operand']
  %s0 = inlined_call_operand.vmem [shape: s32[16,1], index: 0, kind: input, shape index: {}]
  %s1 = inlined_call_operand.vmem [shape: f32[16,128], index: 1, kind: input, shape index: {}]
  %s2 = inlined_call_operand.hbm [shape: f32[2,1,128], index: 2, kind: output, shape index: {0}]
  %s3 = inlined_call_operand.hbm [shape: f32[2,1,128], index: 3, kind: output, shape index: {1}]
  %4 = xla_tuple %s2, %s3
  %s5 = sld [smem:[#allocation0]]
  $region57: #{tpu_custom_call.1} parent=0
    _
  %s7 = ssub.s32 1, %s5
  %s8 = scalar_select 0, %s7, %s5
  $region1: #{tpu_custom_call.1} parent=0
    #allocation7 [shape = 'u8[1024]{0}', space=vmem, size = 0x400, scoped, tag = 'output window, operand 0']
    #allocation8 [shape = 's32[2]{0}', space=sflag, size = 0x8, scoped, tag = 'scoped memory for tpu_custom_call.1']
    #allocation9 [shape = 'u8[1024]{0}', space=vmem, size = 0x400, scoped, tag = 'output window, operand 1']
    #allocation10 [shape = 's32[2]{0}', space=sflag, size = 0x8, scoped, tag = 'scoped memory for tpu_custom_call.1']
    %9 = vsyncpa [#allocation8], 0
    %s10 = scalar_lea.sflag [#allocation8], 1
    %11 = vsyncpa %s10, 0
    %12 = vsyncpa [#allocation10], 0
    %s13 = scalar_lea.sflag [#allocation10], 1
    %14 = vsyncpa %s13, 0
    loop: start=0, step=1, limit=4
    $region2: #{tpu_custom_call.1} parent=1 // loop_pre_header
      _
    $region3: #{tpu_custom_call.1} parent=1 // loop_header
      %s16 = sphi 0, %s20
      %p17 = scmp.ge.s32.totalorder %s16, 4
      %s23 = sphi 0, %s35
      %s24 = sphi 0, %s31
      %s25 = sphi 0, %s23
      %s26 = sphi 0, %s24
      %s27 = sphi 0, %s25
      %s28 = sphi 0, %s26
      %s38 = sphi 0, %s40
      %s41 = sphi 0, %s38
      %s42 = sphi 0, %s41
      %s58 = sphi 0, %s42
      %s66 = sphi 0, %s68
      %s69 = sphi 0, %s66
      %s70 = sphi 0, %s69
      %s86 = sphi 0, %s70
      %s92 = sphi 0, %s94
      %s95 = sphi 0, %s92
      %s96 = sphi 0, %s95
      %s112 = sphi 0, %s96
      %s118 = sphi 0, %s120
      %s121 = sphi 0, %s118
      %s122 = sphi 0, %s121
      %s138 = sphi 0, %s122
    $region4: #{tpu_custom_call.1} parent=1 // loop_header_branch
      %19 = sbr.rel (%p17) target = $region8
    $region5: #{tpu_custom_call.1} parent=1 // loop_body
      %s21 = ssub.s32 %s16, 1
      %s22 = ssub.s32 %s16, 2
      %s29 = sadd.s32 1, %s24
      %p30 = scmp.ge.s32.totalorder %s29, 1
      %s31 = scalar_select %p30, 0, %s29
      %s32 = sadd.s32 1, %s23
      %s33 = scalar_select %p30, %s32, %s23
      %p34 = scmp.ge.s32.totalorder %s33, 2
      %s35 = scalar_select %p34, 0, %s33
      %s36 = ssub.s32 %s23, %s35
      %p37 = scmp.eq.s32.totalorder %s36, 0
      %s39 = sadd.s32 %s38, 1
      %s40 = scalar_select %p37, %s38, %s39
      %p43 = pneg %p37
      %p44 = scmp.eq.s32.totalorder %s16, 1
      %p45 = por %p43, %p44
      %p46 = scmp.ne.s32.totalorder %s38, %s41
      %p47 = scmp.eq.s32.totalorder %s16, 0
      %p48 = por %p46, %p47
      %p49 = scmp.ne.s32.totalorder %s38, %s41
      %p50 = scmp.eq.s32.totalorder %s21, 1
      %p51 = por %p49, %p50
      %p52 = scmp.ne.s32.totalorder %s41, %s42
      %p53 = scmp.eq.s32.totalorder %s21, 0
      %p54 = por %p52, %p53
      %p55 = scmp.ne.s32.totalorder %s41, %s42
      %p56 = scmp.eq.s32.totalorder %s22, 1
      %p57 = por %p55, %p56
      %p59 = scmp.ne.s32.totalorder %s42, %s58
      %p60 = scmp.eq.s32.totalorder %s22, 0
      %p61 = por %p59, %p60
      %s62 = ssub.s32 %s23, %s35
      %s63 = ssub.s32 %s24, %s31
      %s64 = sor.u32 %s62, %s63
      %p65 = scmp.eq.s32.totalorder %s64, 0
      %s67 = sadd.s32 %s66, 1
      %s68 = scalar_select %p65, %s66, %s67
      %p71 = pneg %p65
      %p72 = scmp.eq.s32.totalorder %s16, 1
      %p73 = por %p71, %p72
      %p74 = scmp.ne.s32.totalorder %s66, %s69
      %p75 = scmp.eq.s32.totalorder %s16, 0
      %p76 = por %p74, %p75
      %p77 = scmp.ne.s32.totalorder %s66, %s69
      %p78 = scmp.eq.s32.totalorder %s21, 1
      %p79 = por %p77, %p78
      %p80 = scmp.ne.s32.totalorder %s69, %s70
      %p81 = scmp.eq.s32.totalorder %s21, 0
      %p82 = por %p80, %p81
      %p83 = scmp.ne.s32.totalorder %s69, %s70
      %p84 = scmp.eq.s32.totalorder %s22, 1
      %p85 = por %p83, %p84
      %p87 = scmp.ne.s32.totalorder %s70, %s86
      %p88 = scmp.eq.s32.totalorder %s22, 0
      %p89 = por %p87, %p88
      %s90 = ssub.s32 %s23, %s35
      %p91 = scmp.eq.s32.totalorder %s90, 0
      %s93 = sadd.s32 %s92, 1
      %s94 = scalar_select %p91, %s92, %s93
      %p97 = pneg %p91
      %p98 = scmp.eq.s32.totalorder %s16, 1
      %p99 = por %p97, %p98
      %p100 = scmp.ne.s32.totalorder %s92, %s95
      %p101 = scmp.eq.s32.totalorder %s16, 0
      %p102 = por %p100, %p101
      %p103 = scmp.ne.s32.totalorder %s92, %s95
      %p104 = scmp.eq.s32.totalorder %s21, 1
      %p105 = por %p103, %p104
      %p106 = scmp.ne.s32.totalorder %s95, %s96
      %p107 = scmp.eq.s32.totalorder %s21, 0
      %p108 = por %p106, %p107
      %p109 = scmp.ne.s32.totalorder %s95, %s96
      %p110 = scmp.eq.s32.totalorder %s22, 1
      %p111 = por %p109, %p110
      %p113 = scmp.ne.s32.totalorder %s96, %s112
      %p114 = scmp.eq.s32.totalorder %s22, 0
      %p115 = por %p113, %p114
      %s116 = ssub.s32 %s23, %s35
      %p117 = scmp.eq.s32.totalorder %s116, 0
      %s119 = sadd.s32 %s118, 1
      %s120 = scalar_select %p117, %s118, %s119
      %p123 = pneg %p117
      %p124 = scmp.eq.s32.totalorder %s16, 1
      %p125 = por %p123, %p124
      %p126 = scmp.ne.s32.totalorder %s118, %s121
      %p127 = scmp.eq.s32.totalorder %s16, 0
      %p128 = por %p126, %p127
      %p129 = scmp.ne.s32.totalorder %s118, %s121
      %p130 = scmp.eq.s32.totalorder %s21, 1
      %p131 = por %p129, %p130
      %p132 = scmp.ne.s32.totalorder %s121, %s122
      %p133 = scmp.eq.s32.totalorder %s21, 0
      %p134 = por %p132, %p133
      %p135 = scmp.ne.s32.totalorder %s121, %s122
      %p136 = scmp.eq.s32.totalorder %s22, 1
      %p137 = por %p135, %p136
      %p139 = scmp.ne.s32.totalorder %s122, %s138
      %p140 = scmp.eq.s32.totalorder %s22, 0
      %p141 = por %p139, %p140
      %p142 = scmp.le.s32.totalorder 1, %s16
      %p143 = scmp.lt.s32.totalorder %s16, 3
      %p144 = pnand %p142, %p143
      %p145 = pneg %p144
      // Predicated region
      $region9: #{tpu_custom_call.1} parent=5 // pred_check
        _
      $region10: #{tpu_custom_call.1} parent=5 // pred_check_branch
        %147 = sbr.rel (%p144) target = $region12
      $region11: #{tpu_custom_call.1} parent=5 // pred_region
        %s148 = ssub.s32 %s16, 1
      $region12: #{tpu_custom_call.1} parent=5 // pred_fallthru
        _
      %p149 = scmp.lt.s32.totalorder %s16, 2
      // Predicated region
      $region13: #{tpu_custom_call.1} parent=5 // pred_check
        %p150 = pneg %p149
      $region14: #{tpu_custom_call.1} parent=5 // pred_check_branch
        %152 = sbr.rel (%p150) target = $region16
      $region15: #{tpu_custom_call.1} parent=5 // pred_region
        // Predicated region
        $region17: #{tpu_custom_call.1} parent=15 // pred_check
          %p153 = pneg %p48
        $region18: #{tpu_custom_call.1} parent=15 // pred_check_branch
          %155 = sbr.rel (%p153) target = $region20
        $region19: #{tpu_custom_call.1} parent=15 // pred_region
          %p156 = scmp.lt.s32.totalorder %s23, 1
          %s157 = scalar_select %p156, %s23, 1
          %s158 = smul.addr %s157, 8
          %s159 = scalar_lea.vmem %s0, %s158
        $region20: #{tpu_custom_call.1} parent=15 // pred_fallthru
          _
        // Predicated region
        $region21: #{tpu_custom_call.1} parent=15 // pred_check
          %p160 = pneg %p76
        $region22: #{tpu_custom_call.1} parent=15 // pred_check_branch
          %162 = sbr.rel (%p160) target = $region24
        $region23: #{tpu_custom_call.1} parent=15 // pred_region
          %p163 = scmp.lt.s32.totalorder %s23, 1
          %s164 = scalar_select %p163, %s23, 1
          %p165 = scmp.lt.s32.totalorder %s24, 0
          %s166 = scalar_select %p165, %s24, 0
          %s167 = sadd.s32 %s166, %s164
          %s168 = smul.addr %s167, 8
          %s169 = scalar_lea.vmem %s1, %s168
        $region24: #{tpu_custom_call.1} parent=15 // pred_fallthru
          _
      $region16: #{tpu_custom_call.1} parent=5 // pred_fallthru
        _
      %p170 = scmp.le.s32.totalorder 1, %s16
      %p171 = scmp.lt.s32.totalorder %s16, 3
      %p172 = pnand %p170, %p171
      %p173 = pneg %p172
      // Predicated region
      $region25: #{tpu_custom_call.1} parent=5 // pred_check
        _
      $region26: #{tpu_custom_call.1} parent=5 // pred_check_branch
        %175 = sbr.rel (%p172) target = $region28
      $region27: #{tpu_custom_call.1} parent=5 // pred_region
        %s176 = ssub.s32 %s16, 1
        %p177 = scmp.lt.s32.totalorder %s25, 1
        %s178 = scalar_select %p177, %s25, 1
        %s179 = smul.addr %s178, 8
        %s180 = scalar_lea.vmem %s0, %s179
        %p181 = pneg %p54
        %p182 = pneg %p51
        %p183 = scmp.lt.s32.totalorder %s25, 1
        %s184 = scalar_select %p183, %s25, 1
        %p185 = scmp.lt.s32.totalorder %s26, 0
        %s186 = scalar_select %p185, %s26, 0
        %s187 = sadd.s32 %s186, %s184
        %s188 = smul.addr %s187, 8
        %s189 = scalar_lea.vmem %s1, %s188
        %p190 = pneg %p82
        %p191 = pneg %p79
        %p192 = pneg %p108
        %p193 = pneg %p105
        %s194 = sand.u32 %s95, 1
        %s195 = scalar_lea.sflag [#allocation8], %s194
        %s196 = sand.u32 %s95, 1
        %s197 = scalar_lea.vmem [#allocation7], %s196
        %p198 = pneg %p134
        %p199 = pneg %p131
        %s200 = sand.u32 %s121, 1
        %s201 = scalar_lea.sflag [#allocation10], %s200
        %s202 = sand.u32 %s121, 1
        %s203 = scalar_lea.vmem [#allocation9], %s202
        %p204 = scmp.lt.s32.totalorder %s25, 1
        %s205 = scalar_select %p204, %s25, 1
        %s206 = smul.addr %s205, 8
        %s207 = scalar_lea.vmem %s0, %s206
        %p208 = scmp.lt.s32.totalorder %s25, 1
        %s209 = scalar_select %p208, %s25, 1
        %p210 = scmp.lt.s32.totalorder %s26, 0
        %s211 = scalar_select %p210, %s26, 0
        %s212 = sadd.s32 %s211, %s209
        %s213 = smul.addr %s212, 8
        %s214 = scalar_lea.vmem %s1, %s213
        %p215 = scmp.eq.s32.totalorder %s26, 0
        // Predicated region
        $region29: #{tpu_custom_call.1} parent=27 // pred_check
          %p216 = pneg %p215
        $region30: #{tpu_custom_call.1} parent=27 // pred_check_branch
          %218 = sbr.rel (%p216) target = $region32
        $region31: #{tpu_custom_call.1} parent=27 // pred_region
          %vm219 = vcmask 7168
          %220 = vst.msk [vmem:[#allocation2] sm:$0xff] %vm219, -inf
          %221 = vst.msk [vmem:[#allocation3] sm:$0xff] %vm219, 0.0
          %222 = vst.msk [vmem:[#allocation4] sm:$0xff] %vm219, 0.0
          %223 = vst.msk [vmem:[#allocation5] sm:$0xff] %vm219, 0.0
          %224 = vst.msk [vmem:[#allocation6] sm:$0xff] %vm219, 0.0
        $region32: #{tpu_custom_call.1} parent=27 // pred_fallthru
          _
        %v225 = vld [vmem:[%s207] sm:$0xff]
        %v226 = vld [vmem:[%s214] sm:$0xff]
        %v227 = vld [vmem:[#allocation4] sm:$0xff]
        %228 = vadd.xlane.f32.xlu0 %v226
        %v229 = vpop.xlane.xlu0 %228
        %v230 = vadd.f32 %v227, %v229
        %vm231 = vcmask 7168
        %232 = vst.msk [vmem:[#allocation4] sm:$0xff] %vm231, %v230
        %v233 = vlaneseq
        %v234 = vand.u32 %v233, 127
        %v235 = vld [vmem:[#allocation5] sm:$0xff]
        %s236 = smul.u32 %s26, 128
        %v237 = vstv %s236
        %v238 = vsub.s32 %v225, %v237
        %239 = vset.pattern.permute.xlu0 0
        %240 = vperm.xlu0 %239, %v238
        %v241 = vpop.permute.xlu0 %240
        %vm242 = vcmp.eq.s32.totalorder %v234, %v241
        %v243 = vsel %vm242, %v226, 0.0
        %244 = vadd.xlane.f32.xlu0 %v243
        %v245 = vpop.xlane.xlu0 %244
        %v246 = vadd.f32 %v235, %v245
        %247 = vst.msk [vmem:[#allocation5] sm:$0xff] %vm231, %v246
        %v248 = vld [vmem:[#allocation2] sm:$0xff]
        %249 = vmax.xlane.f32.xlu0 %v226
        %v250 = vpop.xlane.xlu0 %249
        %v251 = vmax.f32 %v248, %v250
        %v252 = vld [vmem:[#allocation3] sm:$0xff]
        %v253 = vsub.f32 %v248, %v251
        %v254 = vmul.f32 %v253, 1.442695
        %v255 = vpow.pop %v254
        %v256 = vmul.f32 %v252, %v255
        %258 = vset.pattern.permute.xlu0 0
        %259 = vperm.xlu0 %258, %v251
        %v260 = vpop.permute.xlu0 %259
        %v262 = vsub.f32 %v226, %v260
        %v263 = vmul.f32 %v262, 1.442695
        %v264 = vpow.pop %v263
        %265 = vadd.xlane.f32.xlu0 %v264
        %v266 = vpop.xlane.xlu0 %265
        %v267 = vadd.f32 %v256, %v266
        %268 = vst.msk [vmem:[#allocation3] sm:$0xff] %vm231, %v267
        %269 = vst.msk [vmem:[#allocation2] sm:$0xff] %vm231, %v251
        // Predicated region
        $region33: #{tpu_custom_call.1} parent=27 // pred_check
          %p270 = pneg %p215
        $region34: #{tpu_custom_call.1} parent=27 // pred_check_branch
          %272 = sbr.rel (%p270) target = $region36
        $region35: #{tpu_custom_call.1} parent=27 // pred_region
          %273 = vst.msk [vmem:[#allocation6] sm:$0xff] %vm231, %v226
          %v274 = vld [vmem:[#allocation2] sm:$0xff]
          %v275 = vld [vmem:[#allocation3] sm:$0xff]
          %v276 = vlog2.pop %v275
          %v277 = vmul.f32 %v276, 0.6931472
          %v278 = vadd.f32 %v274, %v277
          %v279 = vld [vmem:[#allocation4] sm:$0xff]
          %v280 = vmul.f32 %v279, 0.0007936508
          %v281 = vld [vmem:[#allocation5] sm:$0xff]
          %v282 = vmul.f32 %v281, 0.89920634
          %v283 = vadd.f32 %v280, %v282
          %v284 = vld [vmem:[#allocation6] sm:$0xff]
          %v285 = vmul.f32 %v284, 0.0007936508
          %v286 = vsub.f32 %v283, %v285
          %v287 = vadd.f32 %v278, -0.8087112
          %v288 = vsub.f32 %v287, %v286
          %v289 = vlaneseq
          %v290 = vshrl.u32 %v289, 7
          %s291 = smul.u32 %s25, 8
          %v292 = vstv %s291
          %v293 = vadd.s32 %v290, %v292
          %vm294 = vcmp.lt.s32.totalorder %v293, 16
          %vm295 = vcmp.ne.s32.totalorder %v225, 0
          %vm296 = vmand %vm294, %vm295
          %v297 = vsel %vm296, %v288, 0.0
          %v298 = vsel %vm231, %v297, 0.0
          %299 = vadd.xlane.f32.xlu0 %v298
          %v300 = vpop.xlane.xlu0 %299
          %v301 = vrot.slane %v300, 4
          %v302 = vadd.f32 %v300, %v301
          %v303 = vrot.slane %v302, 2
          %v304 = vadd.f32 %v302, %v303
          %v305 = vrot.slane %v304, 1
          %v306 = vadd.f32 %v304, %v305
          %s307 = vtos %v306
          %v308 = vsel %vm296, 1.0, 0.0
          %v309 = vsel %vm231, %v308, 0.0
          %310 = vadd.xlane.f32.xlu0 %v309
          %v311 = vpop.xlane.xlu0 %310
          %v312 = vrot.slane %v311, 4
          %v313 = vadd.f32 %v311, %v312
          %v314 = vrot.slane %v313, 2
          %v315 = vadd.f32 %v313, %v314
          %v316 = vrot.slane %v315, 1
          %v317 = vadd.f32 %v315, %v316
          %s318 = vtos %v317
          %v319 = vstv %s307
          %320 = vst [vmem:[%s197] sm:$0x1] %v319
          %v321 = vstv %s318
          %322 = vst [vmem:[%s203] sm:$0x1] %v321
        $region36: #{tpu_custom_call.1} parent=27 // pred_fallthru
          _
        %s323 = sand.u32 %s95, 1
        %s324 = scalar_lea.sflag [#allocation8], %s323
        %s325 = sand.u32 %s95, 1
        %s326 = scalar_lea.vmem [#allocation7], %s325
        %s327 = sand.u32 %s121, 1
        %s328 = scalar_lea.sflag [#allocation10], %s327
        %s329 = sand.u32 %s121, 1
        %s330 = scalar_lea.vmem [#allocation9], %s329
        // Predicated region
        $region37: #{tpu_custom_call.1} parent=27 // pred_check
          %p331 = pneg %p105
        $region38: #{tpu_custom_call.1} parent=27 // pred_check_branch
          %333 = sbr.rel (%p331) target = $region40
        $region39: #{tpu_custom_call.1} parent=27 // pred_region
          %s335 = ssub.s32 16, 16
          %336 = vsyncadd %s324, %s335
          %s337 = smul.addr %s25, 16
          %s338 = scalar_lea.hbm %s2, %s337
          %s340 = sshll.u32 %s326, 4
          %s341 = int_to_ptr.vmem [resolvable:$true] %s340
          %343 = dma.vmem_to_hbm [thread:$0]  %s341, 16, %s338, %s324
        $region40: #{tpu_custom_call.1} parent=27 // pred_fallthru
          _
        // Predicated region
        $region41: #{tpu_custom_call.1} parent=27 // pred_check
          %p344 = pneg %p131
        $region42: #{tpu_custom_call.1} parent=27 // pred_check_branch
          %346 = sbr.rel (%p344) target = $region44
        $region43: #{tpu_custom_call.1} parent=27 // pred_region
          %s348 = ssub.s32 16, 16
          %349 = vsyncadd %s328, %s348
          %s350 = smul.addr %s25, 16
          %s351 = scalar_lea.hbm %s3, %s350
          %s353 = sshll.u32 %s330, 4
          %s354 = int_to_ptr.vmem [resolvable:$true] %s353
          %356 = dma.vmem_to_hbm [thread:$0]  %s354, 16, %s351, %s328
        $region44: #{tpu_custom_call.1} parent=27 // pred_fallthru
          _
      $region28: #{tpu_custom_call.1} parent=5 // pred_fallthru
        _
      %p357 = scmp.le.s32.totalorder 2, %s16
      // Predicated region
      $region45: #{tpu_custom_call.1} parent=5 // pred_check
        %p358 = pneg %p357
      $region46: #{tpu_custom_call.1} parent=5 // pred_check_branch
        %360 = sbr.rel (%p358) target = $region48
      $region47: #{tpu_custom_call.1} parent=5 // pred_region
        %s361 = ssub.s32 %s16, 2
        // Predicated region
        $region49: #{tpu_custom_call.1} parent=47 // pred_check
          %p362 = pneg %p111
        $region50: #{tpu_custom_call.1} parent=47 // pred_check_branch
          %364 = sbr.rel (%p362) target = $region52
        $region51: #{tpu_custom_call.1} parent=47 // pred_region
          %s365 = sand.u32 %s96, 1
          %s366 = scalar_lea.sflag [#allocation8], %s365
          %s367 = sand.u32 %s96, 1
          %s368 = scalar_lea.vmem [#allocation7], %s367
          %369 = dma.done %s366, 16
        $region52: #{tpu_custom_call.1} parent=47 // pred_fallthru
          _
        // Predicated region
        $region53: #{tpu_custom_call.1} parent=47 // pred_check
          %p370 = pneg %p137
        $region54: #{tpu_custom_call.1} parent=47 // pred_check_branch
          %372 = sbr.rel (%p370) target = $region56
        $region55: #{tpu_custom_call.1} parent=47 // pred_region
          %s373 = sand.u32 %s122, 1
          %s374 = scalar_lea.sflag [#allocation10], %s373
          %s375 = sand.u32 %s122, 1
          %s376 = scalar_lea.vmem [#allocation9], %s375
          %377 = dma.done %s374, 16
        $region56: #{tpu_custom_call.1} parent=47 // pred_fallthru
          _
      $region48: #{tpu_custom_call.1} parent=5 // pred_fallthru
        _
    $region6: #{tpu_custom_call.1} parent=1 // loop_footer
      %s20 = sadd.s32 1, %s16
    $region7: #{tpu_custom_call.1} parent=1 // loop_footer_branch
      %15 = sbr.rel target = $region3
    $region8: #{tpu_custom_call.1} parent=1 // loop_exit
      _
    %378 = vsyncpa [#allocation8], 1
    %s379 = scalar_lea.sflag [#allocation8], 1
    %380 = vsyncpa %s379, 1
    %381 = vsyncpa [#allocation10], 1
    %s382 = scalar_lea.sflag [#allocation10], 1
    %383 = vsyncpa %s382, 1

</llo_original>
